<compile_context>
chip_gen: v7x
topology: tpu7x:2x2x1
jax: 0.10.0
libtpu: 0.0.40
codegen_flags: <defaults>
</compile_context>

<pallas_src>
import functools

import jax
import jax.numpy as jnp
from jax import lax
from jax.experimental import pallas as pl
from jax.experimental.pallas import tpu as pltpu


# -------------------- fused EnsembleHead + 2-way softmax ------------------- #

def ensemble_head_softmax_kernel(xd_ref, xt_ref, wd_ref, wt_ref, b_ref, o_ref,
                                 *, approx=False):
    # xd_ref: (tm, Hd), xt_ref: (tm, Ht)  activations (bf16 or f32)
    # wd_ref: (2, Hd),  wt_ref: (2, Ht)   nn.Linear weight split along concat axis
    # b_ref:  (2, 1)                      bias
    # o_ref:  (2, tm) f32                 softmax weights, row 0 = draft, row 1 = target
    xd = xd_ref[...]
    xt = xt_ref[...]
    wd = wd_ref[...]
    wt = wt_ref[...]
    if wd.dtype != xd.dtype:
        wd = wd.astype(xd.dtype)   # bf16 x -> bf16 MXU (exact products, f32 acc)
    if wt.dtype != xt.dtype:
        wt = wt.astype(xt.dtype)
    dn = (((1,), (1,)), ((), ()))  # contract the hidden dim of both operands
    logits = lax.dot_general(wd, xd, dn, preferred_element_type=jnp.float32)
    logits = logits + lax.dot_general(wt, xt, dn, preferred_element_type=jnp.float32)
    logits = logits + b_ref[...].astype(jnp.float32)              # (2, tm) f32
    # fused 2-way softmax over axis 0 (EUP exp + reciprocal; slots are free here)
    m = jnp.max(logits, axis=0, keepdims=True)                    # (1, tm)
    e = jnp.exp(logits - m)                                       # (2, tm)
    denom = jnp.sum(e, axis=0, keepdims=True)                     # (1, tm)
    o_ref[...] = e * pl.reciprocal(denom, approx=approx)


def _pick_row_tile(M, h_total, itemsize):
    """Row tile for the head.

    ~4 MiB activation block (double-buffered ~8 MiB), sized against v7x's
    64 MiB VMEM; when M > 128 we force >= 2 blocks along the "parallel" grid
    axis so both v7x TensorCores get work.
    """
    target_bytes = 4 << 20
    tm = (target_bytes // max(1, h_total * itemsize)) // 128 * 128
    tm = int(max(128, min(1024, tm)))
    if M > 128:
        tm = min(tm, max(128, (M // 2) // 128 * 128))
    if tm >= M:
        return M            # single block; block dims equal to full array dims are legal
    return tm               # multiple of 128; ragged last tile handled by Pallas masking


def ensemble_head_softmax_forward(draft_hidden, target_hidden,
                                  w_draft, w_target, bias, *, tm=None, approx=False):
    """Fused [concat -> Linear(H, 2) -> softmax(-1)].

    draft_hidden (..., Hd), target_hidden (..., Ht); w_draft (2, Hd), w_target (2, Ht)
    are the nn.Linear weight split in concat([draft, target], -1) order.
    Returns (..., 2) float32 ensemble weights ([..., 0] = draft, [..., 1] = target).
    """
    *lead, Hd = draft_hidden.shape
    Ht = target_hidden.shape[-1]
    assert w_draft.shape == (2, Hd) and w_target.shape == (2, Ht)
    assert target_hidden.shape[:-1] == tuple(lead)

    xd = draft_hidden.reshape(-1, Hd)
    xt = target_hidden.reshape(-1, Ht)
    M = xd.shape[0]
    h_total = Hd + Ht
    x_itemsize = max(xd.dtype.itemsize, xt.dtype.itemsize)

    if tm is None:
        tm = _pick_row_tile(M, h_total, x_itemsize)
    else:
        tm = int(tm)
        if tm >= M:
            tm = M
        else:
            tm = ((tm + 127) // 128) * 128   # lane-dense (2, tm) output block needs 128-multiples
            tm = M if tm >= M else tm

    b = bias.reshape(2, 1)
    w_itemsize = w_draft.dtype.itemsize

    tile_bytes = (tm * h_total * x_itemsize          # activation blocks
                  + 2 * h_total * w_itemsize         # resident weight
                  + 2 * 1 * b.dtype.itemsize
                  + 2 * tm * 4)                      # f32 output block
    vmem_limit = int(2.5 * tile_bytes) + (2 << 20)
    vmem_limit = max(16 << 20, min(vmem_limit, 32 << 20))   # 32 MiB cap: v7x-safe

    cost = pl.CostEstimate(
        flops=4 * M * h_total + 8 * M,
        transcendentals=2 * M,
        bytes_accessed=(M * (Hd * xd.dtype.itemsize + Ht * xt.dtype.itemsize)
                        + 2 * h_total * w_itemsize + 2 + 2 * M * 4),
    )

    kernel = functools.partial(ensemble_head_softmax_kernel, approx=approx)

    out2m = pl.pallas_call(
        kernel,
        out_shape=jax.ShapeDtypeStruct((2, M), jnp.float32),   # lane-dense output
        grid_spec=pltpu.PrefetchScalarGridSpec(
            num_scalar_prefetch=0,
            grid=(pl.cdiv(M, tm),),
            in_specs=[
                pl.BlockSpec((tm, Hd), lambda i: (i, 0)),   # draft rows
                pl.BlockSpec((tm, Ht), lambda i: (i, 0)),   # target rows
                pl.BlockSpec((2, Hd), lambda i: (0, 0)),    # resident weight (draft half)
                pl.BlockSpec((2, Ht), lambda i: (0, 0)),    # resident weight (target half)
                pl.BlockSpec((2, 1), lambda i: (0, 0)),     # bias
            ],
            out_specs=pl.BlockSpec((2, tm), lambda i: (0, i)),
        ),
        compiler_params=pltpu.CompilerParams(
            dimension_semantics=("parallel",),
            vmem_limit_bytes=vmem_limit,
        ),
        cost_estimate=cost,
    )(xd, xt, w_draft, w_target, b)

    return out2m.T.reshape(*lead, 2)    # tiny (2, M) -> (M, 2) transpose only


# -------------------- logit mixing (weighted sum over vocab) --------------- #

def ensemble_combine_kernel(w_ref, dl_ref, tl_ref, o_ref, *, fma_mix=False):
    # w_ref: (tm, 2) f32 softmax weights ([:,0]=draft, [:,1]=target); dl/tl: (tm, tv)
    w = w_ref[...]
    d = dl_ref[...].astype(jnp.float32)
    t = tl_ref[...].astype(jnp.float32)
    if fma_mix:
        # w_draft + w_target == 1: one fewer mul/broadcast per element (v7x VPU headroom)
        mixed = t + w[:, 0:1] * (d - t)
    else:
        # bit-matches the fp32 reference mixing
        mixed = d * w[:, 0:1] + t * w[:, 1:2]
    o_ref[...] = mixed.astype(o_ref.dtype)


def ensemble_combine(weights, draft_logits, target_logits, *, tm=None, tv=None,
                     fma_mix=False, out_dtype=jnp.float32):
    """weights (..., 2) f32, logits (..., V) -> mixed logits (..., V) in out_dtype."""
    *lead, V = draft_logits.shape
    w2d = weights.reshape(-1, 2).astype(jnp.float32)
    d2d = draft_logits.reshape(-1, V)
    t2d = target_logits.reshape(-1, V)
    M = d2d.shape[0]

    if tm is None:
        tm = M if M <= 256 else 256
    else:
        tm = int(tm)
        tm = M if tm >= M else max(8, (tm // 8) * 8)
    if tv is None:
        tv = V if V <= 4096 else 4096            # ~2 MiB bf16 input blocks at 256x4096
    else:
        tv = int(tv)
        tv = V if tv >= V else max(128, (tv // 128) * 128)

    out_itemsize = jnp.dtype(out_dtype).itemsize
    tile_bytes = tm * tv * (d2d.dtype.itemsize + t2d.dtype.itemsize + out_itemsize) + tm * 2 * 4
    vmem_limit = max(16 << 20, min(2 * tile_bytes + (4 << 20), 32 << 20))

    cost = pl.CostEstimate(
        flops=3 * M * V,
        transcendentals=0,
        bytes_accessed=M * V * (d2d.dtype.itemsize + t2d.dtype.itemsize + out_itemsize) + M * 2 * 4,
    )

    kernel = functools.partial(ensemble_combine_kernel, fma_mix=fma_mix)

    out2d = pl.pallas_call(
        kernel,
        out_shape=jax.ShapeDtypeStruct((M, V), out_dtype),
        grid_spec=pltpu.PrefetchScalarGridSpec(
            num_scalar_prefetch=0,
            grid=(pl.cdiv(M, tm), pl.cdiv(V, tv)),
            in_specs=[
                pl.BlockSpec((tm, 2), lambda i, j: (i, 0)),
                pl.BlockSpec((tm, tv), lambda i, j: (i, j)),
                pl.BlockSpec((tm, tv), lambda i, j: (i, j)),
            ],
            out_specs=pl.BlockSpec((tm, tv), lambda i, j: (i, j)),
        ),
        compiler_params=pltpu.CompilerParams(
            dimension_semantics=("parallel", "parallel"),
            vmem_limit_bytes=vmem_limit,
        ),
        cost_estimate=cost,
    )(w2d, d2d, t2d)

    return out2d.reshape(*lead, V)


# ------------------------- EnsembleWrapper forward ------------------------- #

def ensemble_wrapper_forward(draft_last_hidden, target_last_hidden,
                             draft_logits, target_logits, weight, bias,
                             *, approx_softmax=False, fma_mix=False,
                             logits_dtype=jnp.float32):
    # TODO(synk): the target_model / draft_model transformer backbones (and their
    # KV caches) are not translated; this consumes their precomputed outputs.
    Hd = draft_last_hidden.shape[-1]
    Ht = target_last_hidden.shape[-1]
    assert weight.shape == (2, Hd + Ht)
    # Split the nn.Linear weight along the concat([draft, target], -1) axis so the
    # concatenation is fused into the head kernel (never materialized in HBM).
    w_d_part = weight[:, :Hd]
    w_t_part = weight[:, Hd:]
    ensemble_weights = ensemble_head_softmax_forward(
        draft_last_hidden, target_last_hidden, w_d_part, w_t_part, bias,
        approx=approx_softmax)                                     # (..., 2) f32
    logits = ensemble_combine(ensemble_weights, draft_logits, target_logits,
                              fma_mix=fma_mix, out_dtype=logits_dtype)
    w_draft = ensemble_weights[..., 0:1]
    w_target = ensemble_weights[..., 1:2]
    return logits, w_draft, w_target


def init_params(target_hidden_size, draft_hidden_size, key):
    """EnsembleHead._equal_init: one Gaussian row * 0.01 repeated twice, zero bias, bf16."""
    hidden_size = target_hidden_size + draft_hidden_size
    w_row = jax.random.normal(key, (hidden_size,), dtype=jnp.float32) * 0.01
    weight = jnp.tile(w_row[None, :], (2, 1)).astype(jnp.bfloat16)   # (2, H) = nn.Linear layout
    bias = jnp.zeros((2,), dtype=jnp.bfloat16)
    return weight, bias


if __name__ == "__main__":
    target_hidden_size = 32
    draft_hidden_size = 32
    H = target_hidden_size + draft_hidden_size
    B, S, V = 2, 8, 128

    key = jax.random.PRNGKey(0)
    k_w, k_d, k_t, k_dl, k_tl, k_r1, k_r2, k_w2, k_b2 = jax.random.split(key, 9)
    weight, bias = init_params(target_hidden_size, draft_hidden_size, k_w)

    draft_hidden = jax.random.normal(k_d, (B, S, draft_hidden_size), dtype=jnp.bfloat16)
    target_hidden = jax.random.normal(k_t, (B, S, target_hidden_size), dtype=jnp.bfloat16)
    draft_logits = jax.random.normal(k_dl, (B, S, V), dtype=jnp.bfloat16)
    target_logits = jax.random.normal(k_tl, (B, S, V), dtype=jnp.bfloat16)

    def reference(w, b):
        x = jnp.concatenate([draft_hidden, target_hidden], axis=-1).astype(jnp.float32)
        ens = x @ w.T.astype(jnp.float32) + b.astype(jnp.float32)
        wsm = jax.nn.softmax(ens, axis=-1)
        lg = (draft_logits.astype(jnp.float32) * wsm[..., 0:1]
              + target_logits.astype(jnp.float32) * wsm[..., 1:2])
        return lg, wsm

    # ---- _equal_init weights (both rows identical -> ensemble weights ~0.5) ----
    logits, w_draft, w_target = ensemble_wrapper_forward(
        draft_hidden, target_hidden, draft_logits, target_logits, weight, bias)
    logits = jax.block_until_ready(logits)
    logits_ref, w_ref = reference(weight, bias)
    assert logits.shape == (B, S, V) and logits.dtype == jnp.float32
    assert w_draft.shape == (B, S, 1) and w_target.shape == (B, S, 1)
    assert jnp.allclose(w_draft, w_ref[..., 0:1], atol=1e-4, rtol=1e-4)
    assert jnp.allclose(w_target, w_ref[..., 1:2], atol=1e-4, rtol=1e-4)
    assert jnp.allclose(logits, logits_ref, atol=1e-4, rtol=1e-4)

    # ---- non-degenerate weights: checks draft/target ordering through the split ----
    w2 = (jax.random.normal(k_w2, (2, H), dtype=jnp.float32) * 0.01).astype(jnp.bfloat16)
    b2 = (jax.random.normal(k_b2, (2,), dtype=jnp.float32) * 0.01).astype(jnp.bfloat16)
    logits2, wd2, wt2 = ensemble_wrapper_forward(
        draft_hidden, target_hidden, draft_logits, target_logits, w2, b2)
    logits2 = jax.block_until_ready(logits2)
    logits2_ref, w2_ref = reference(w2, b2)
    assert jnp.allclose(wd2, w2_ref[..., 0:1], atol=1e-4, rtol=1e-4)
    assert jnp.allclose(wt2, w2_ref[..., 1:2], atol=1e-4, rtol=1e-4)
    assert jnp.allclose(logits2, logits2_ref, atol=1e-4, rtol=1e-4)

    # ---- optional fast paths (approx softmax recip, fma mix, bf16 logits) ----
    logits3, _, _ = ensemble_wrapper_forward(
        draft_hidden, target_hidden, draft_logits, target_logits, w2, b2,
        approx_softmax=True, fma_mix=True, logits_dtype=jnp.bfloat16)
    logits3 = jax.block_until_ready(logits3)
    assert logits3.dtype == jnp.bfloat16
    assert jnp.allclose(logits3.astype(jnp.float32), logits2_ref, atol=5e-2, rtol=5e-2)

    # ---- ragged-M head path: 200 rows with a 128-row tile (masked last block) ----
    xdr = jax.random.normal(k_r1, (1, 200, draft_hidden_size), dtype=jnp.bfloat16)
    xtr = jax.random.normal(k_r2, (1, 200, target_hidden_size), dtype=jnp.bfloat16)
    wts_r = jax.block_until_ready(ensemble_head_softmax_forward(
        xdr, xtr, w2[:, :draft_hidden_size], w2[:, draft_hidden_size:], b2, tm=128))
    xr = jnp.concatenate([xdr, xtr], axis=-1).astype(jnp.float32)
    ens_r = xr @ w2.T.astype(jnp.float32) + b2.astype(jnp.float32)
    wts_r_ref = jax.nn.softmax(ens_r, axis=-1)
    assert wts_r.shape == (1, 200, 2) and wts_r.dtype == jnp.float32
    assert jnp.allclose(wts_r, wts_r_ref, atol=1e-4, rtol=1e-4)

    print("KERNEL_OK")
</pallas_src>

<mosaic_0001>
module attributes {stable_mosaic.version = 11 : i64} {
  func.func @ensemble_head_softmax_kernel(%arg0: i32, %arg1: memref<16x32xbf16, #tpu.memory_space<vmem>>, %arg2: memref<16x32xbf16, #tpu.memory_space<vmem>>, %arg3: memref<2x32xbf16, #tpu.memory_space<vmem>>, %arg4: memref<2x32xbf16, #tpu.memory_space<vmem>>, %arg5: memref<2x1xbf16, #tpu.memory_space<vmem>>, %arg6: memref<2x16xf32, #tpu.memory_space<vmem>>) attributes {dimension_semantics = [#tpu.dimension_semantics<parallel>], iteration_bounds = array<i64: 1>, scalar_prefetch = 0 : i64, scratch_operands = 0 : i64, tpu.core_type = #tpu.core_type<tc>, window_params = [{transform_indices = @transform_0, window_bounds = array<i64: 16, 32>}, {transform_indices = @transform_1, window_bounds = array<i64: 16, 32>}, {pipeline_mode = #tpu.pipeline_mode<synchronous>, transform_indices = @transform_2, window_bounds = array<i64: 2, 32>}, {pipeline_mode = #tpu.pipeline_mode<synchronous>, transform_indices = @transform_3, window_bounds = array<i64: 2, 32>}, {pipeline_mode = #tpu.pipeline_mode<synchronous>, transform_indices = @transform_4, window_bounds = array<i64: 2, 1>}, {transform_indices = @transform_5, window_bounds = array<i64: 2, 16>}]} {
    %c0 = arith.constant 0 : index
    %c0_0 = arith.constant 0 : index
    %0 = vector.load %arg1[%c0, %c0_0] : memref<16x32xbf16, #tpu.memory_space<vmem>>, vector<16x32xbf16>
    %c0_1 = arith.constant 0 : index
    %c0_2 = arith.constant 0 : index
    %1 = vector.load %arg2[%c0_1, %c0_2] : memref<16x32xbf16, #tpu.memory_space<vmem>>, vector<16x32xbf16>
    %c0_3 = arith.constant 0 : index
    %c0_4 = arith.constant 0 : index
    %2 = vector.load %arg3[%c0_3, %c0_4] : memref<2x32xbf16, #tpu.memory_space<vmem>>, vector<2x32xbf16>
    %c0_5 = arith.constant 0 : index
    %c0_6 = arith.constant 0 : index
    %3 = vector.load %arg4[%c0_5, %c0_6] : memref<2x32xbf16, #tpu.memory_space<vmem>>, vector<2x32xbf16>
    %cst = arith.constant dense<0.000000e+00> : vector<2x16xf32>
    %4 = tpu.matmul %2, %0, %cst {dimension_numbers = #tpu.dot_dimension_numbers<[1], [1], [0], [0], [0, 0, 1, 0], [], []>} : vector<2x32xbf16>, vector<16x32xbf16>, vector<2x16xf32> -> vector<2x16xf32>
    %cst_7 = arith.constant dense<0.000000e+00> : vector<2x16xf32>
    %5 = tpu.matmul %3, %1, %cst_7 {dimension_numbers = #tpu.dot_dimension_numbers<[1], [1], [0], [0], [0, 0, 1, 0], [], []>} : vector<2x32xbf16>, vector<16x32xbf16>, vector<2x16xf32> -> vector<2x16xf32>
    %6 = arith.addf %4, %5 : vector<2x16xf32>
    %c0_8 = arith.constant 0 : index
    %c0_9 = arith.constant 0 : index
    %7 = vector.load %arg5[%c0_8, %c0_9] : memref<2x1xbf16, #tpu.memory_space<vmem>>, vector<2x1xbf16>
    %8 = arith.extf %7 : vector<2x1xbf16> to vector<2x1xf32>
    %9 = vector.broadcast %8 : vector<2x1xf32> to vector<2x16xf32>
    %10 = arith.addf %6, %9 : vector<2x16xf32>
    %cst_10 = arith.constant dense<0xFF800000> : vector<16xf32>
    %11 = vector.multi_reduction <maximumf>, %10, %cst_10 [0] : vector<2x16xf32> to vector<16xf32>
    %12 = vector.shape_cast %11 : vector<16xf32> to vector<1x16xf32>
    %13 = vector.broadcast %12 : vector<1x16xf32> to vector<2x16xf32>
    %14 = arith.subf %10, %13 : vector<2x16xf32>
    %15 = math.exp %14 : vector<2x16xf32>
    %cst_11 = arith.constant dense<0.000000e+00> : vector<16xf32>
    %16 = vector.multi_reduction <add>, %15, %cst_11 [0] : vector<2x16xf32> to vector<16xf32>
    %17 = vector.shape_cast %16 : vector<16xf32> to vector<1x16xf32>
    %18 = tpu.reciprocal %17 : vector<1x16xf32> -> vector<1x16xf32>
    %19 = vector.broadcast %18 : vector<1x16xf32> to vector<2x16xf32>
    %20 = arith.mulf %15, %19 : vector<2x16xf32>
    %c0_12 = arith.constant 0 : index
    %c0_13 = arith.constant 0 : index
    %21 = vector.load %arg6[%c0_12, %c0_13] : memref<2x16xf32, #tpu.memory_space<vmem>>, vector<2x16xf32>
    tpu.vector_store %arg6[%c0_12, %c0_13], %20 {strides = array<i32>} : memref<2x16xf32, #tpu.memory_space<vmem>>, vector<2x16xf32>,
    return
  }
  func.func @transform_0(%arg0: i32) -> (i32, i32) {
    %c0_i32 = arith.constant 0 : i32
    %c0_i32_0 = arith.constant 0 : i32
    return %arg0, %c0_i32 : i32, i32
  }
  func.func @transform_1(%arg0: i32) -> (i32, i32) {
    %c0_i32 = arith.constant 0 : i32
    %c0_i32_0 = arith.constant 0 : i32
    return %arg0, %c0_i32 : i32, i32
  }
  func.func @transform_2(%arg0: i32) -> (i32, i32) {
    %c0_i32 = arith.constant 0 : i32
    %c0_i32_0 = arith.constant 0 : i32
    %c0_i32_1 = arith.constant 0 : i32
    return %c0_i32, %c0_i32_0 : i32, i32
  }
  func.func @transform_3(%arg0: i32) -> (i32, i32) {
    %c0_i32 = arith.constant 0 : i32
    %c0_i32_0 = arith.constant 0 : i32
    %c0_i32_1 = arith.constant 0 : i32
    return %c0_i32, %c0_i32_0 : i32, i32
  }
  func.func @transform_4(%arg0: i32) -> (i32, i32) {
    %c0_i32 = arith.constant 0 : i32
    %c0_i32_0 = arith.constant 0 : i32
    %c0_i32_1 = arith.constant 0 : i32
    return %c0_i32, %c0_i32_0 : i32, i32
  }
  func.func @transform_5(%arg0: i32) -> (i32, i32) {
    %c0_i32 = arith.constant 0 : i32
    %c0_i32_0 = arith.constant 0 : i32
    return %c0_i32, %arg0 : i32, i32
  }
}

</mosaic_0001>

<llo_original>
// kernel: tpu_custom_call.1
$region0: #{tpu_custom_call.1}
  #allocation0 [shape = 'u32[]', space=smem, size = 0x4, offset = 0x4, fixed_abs, tag = 'smem constant byte address 0x4 - core index']
  #allocation1 [shape = 'u32[144,128]{1,0:T(1,128)}', space=vmem, size = 0x12000, scoped, tag = 'internal scratch']
  %s0 = inlined_call_operand.hbm [shape: bf16[16,32], index: 0, kind: input, shape index: {}]
  %s1 = inlined_call_operand.hbm [shape: bf16[16,32], index: 1, kind: input, shape index: {}]
  %s2 = inlined_call_operand.vmem [shape: bf16[2,32], index: 2, kind: input, shape index: {}]
  %s3 = inlined_call_operand.vmem [shape: bf16[2,32], index: 3, kind: input, shape index: {}]
  %s4 = inlined_call_operand.vmem [shape: bf16[2,1], index: 4, kind: input, shape index: {}]
  %s5 = inlined_call_operand.hbm [shape: f32[2,16], index: 5, kind: output, shape index: {}]
  %s6 = sld [smem:[#allocation0]]
  $region38: #{tpu_custom_call.1} parent=0
    _
  %s8 = ssub.s32 1, %s6
  %s9 = scalar_select 0, %s8, %s6
  $region1: #{tpu_custom_call.1} parent=0
    #allocation2 [shape = 'u8[4096]{0}', space=vmem, size = 0x1000, scoped, tag = 'input window, operand 0, single buffered']
    #allocation3 [shape = 's32[1]{0}', space=sflag, size = 0x4, scoped, tag = 'scoped memory for tpu_custom_call.1']
    #allocation4 [shape = 's32[1]{0}', space=sflag, size = 0x4, scoped, tag = 'scoped memory for tpu_custom_call.1']
    #allocation5 [shape = 'u8[4096]{0}', space=vmem, size = 0x1000, scoped, tag = 'input window, operand 1, single buffered']
    #allocation6 [shape = 's32[1]{0}', space=sflag, size = 0x4, scoped, tag = 'scoped memory for tpu_custom_call.1']
    #allocation7 [shape = 'u8[1024]{0}', space=vmem, size = 0x400, scoped, tag = 'output window, operand 0, single buffered']
    %10 = vsyncpa [#allocation3], 0
    %11 = vsyncpa [#allocation6], 0
    %12 = vsyncpa [#allocation4], 0
    // Predicated region
    $region2: #{tpu_custom_call.1} parent=1 // pred_check
      _
    $region3: #{tpu_custom_call.1} parent=1 // pred_check_branch
      %14 = sbr.rel (0) target = $region5
    $region4: #{tpu_custom_call.1} parent=1 // pred_region
      %s16 = ssub.s32 128, 128
      %17 = vsyncadd [#allocation3], %s16
      %s18 = sshll.u32 [#allocation2], 4
      %s19 = int_to_ptr.vmem [resolvable:$true] %s18
      %24 = dma.hbm_to_vmem [thread:$0]  %s0, 128, %s19, [#allocation3], 64, 64, 4
    $region5: #{tpu_custom_call.1} parent=1 // pred_fallthru
      _
    // Predicated region
    $region6: #{tpu_custom_call.1} parent=1 // pred_check
      _
    $region7: #{tpu_custom_call.1} parent=1 // pred_check_branch
      %26 = sbr.rel (0) target = $region9
    $region8: #{tpu_custom_call.1} parent=1 // pred_region
      %s28 = ssub.s32 128, 128
      %29 = vsyncadd [#allocation6], %s28
      %s30 = sshll.u32 [#allocation5], 4
      %s31 = int_to_ptr.vmem [resolvable:$true] %s30
      %36 = dma.hbm_to_vmem [thread:$0]  %s1, 128, %s31, [#allocation6], 64, 64, 4
    $region9: #{tpu_custom_call.1} parent=1 // pred_fallthru
      _
    // Predicated region
    $region10: #{tpu_custom_call.1} parent=1 // pred_check
      _
    $region11: #{tpu_custom_call.1} parent=1 // pred_check_branch
      %38 = sbr.rel (0) target = $region13
    $region12: #{tpu_custom_call.1} parent=1 // pred_region
      _
    $region13: #{tpu_custom_call.1} parent=1 // pred_fallthru
      _
    // Predicated region
    $region14: #{tpu_custom_call.1} parent=1 // pred_check
      _
    $region15: #{tpu_custom_call.1} parent=1 // pred_check_branch
      %40 = sbr.rel (0) target = $region17
    $region16: #{tpu_custom_call.1} parent=1 // pred_region
      _
    $region17: #{tpu_custom_call.1} parent=1 // pred_fallthru
      _
    // Predicated region
    $region18: #{tpu_custom_call.1} parent=1 // pred_check
      _
    $region19: #{tpu_custom_call.1} parent=1 // pred_check_branch
      %42 = sbr.rel (0) target = $region21
    $region20: #{tpu_custom_call.1} parent=1 // pred_region
      _
    $region21: #{tpu_custom_call.1} parent=1 // pred_fallthru
      _
    // Predicated region
    $region22: #{tpu_custom_call.1} parent=1 // pred_check
      _
    $region23: #{tpu_custom_call.1} parent=1 // pred_check_branch
      %44 = sbr.rel (0) target = $region25
    $region24: #{tpu_custom_call.1} parent=1 // pred_region
      %45 = dma.done [#allocation3], 128
    $region25: #{tpu_custom_call.1} parent=1 // pred_fallthru
      _
    // Predicated region
    $region26: #{tpu_custom_call.1} parent=1 // pred_check
      _
    $region27: #{tpu_custom_call.1} parent=1 // pred_check_branch
      %47 = sbr.rel (0) target = $region29
    $region28: #{tpu_custom_call.1} parent=1 // pred_region
      %48 = dma.done [#allocation6], 128
    $region29: #{tpu_custom_call.1} parent=1 // pred_fallthru
      _
    %v50 = vld [vmem:[#allocation2] sm:$0xf]
    %v51 = vld [vmem:[#allocation2 + $0x4] sm:$0xf]
    %v52 = vld [vmem:[#allocation5] sm:$0xf]
    %v53 = vld [vmem:[#allocation5 + $0x4] sm:$0xf]
    %v54 = vld [vmem:[%s2] sm:$0x1]
    %v55 = vld [vmem:[%s3] sm:$0x1]
    %v58 = vunpack.c.l.b16 %v52
    %v59 = vunpack.c.l.b16 %v53
    %v60 = vpack.c.b16 %v59, %v58
    %vm61 = vcmask 261120
    %v63 = vsel %vm61, %v55, 0
    %v66 = vsel %vm61, %v60, 0
    %68 = vmatprep.subr.bf16.mxu0 0
    %69 = vmatpush1.bf16.xpose.msra.mxu0 %v66
    %70 = vmatprep.subr.bf16.mxu0 0
    %71 = vmatpush1.bf16.xpose.msra.mxu0 0
    %72 = vmatprep.subr.bf16.mxu0 0
    %73 = vmatpush1.bf16.xpose.msra.mxu0 0
    %74 = vmatprep.subr.bf16.mxu0 0
    %75 = vmatpush1.bf16.xpose.msra.mxu0 0
    %76 = vmatprep.subr.bf16.mxu0 0
    %77 = vmatpush1.bf16.xpose.msra.mxu0 0
    %78 = vmatprep.subr.bf16.mxu0 0
    %79 = vmatpush1.bf16.xpose.msra.mxu0 0
    %80 = vmatprep.subr.bf16.mxu0 0
    %81 = vmatpush1.bf16.xpose.msra.mxu0 0
    %82 = vmatprep.subr.bf16.mxu0 0
    %83 = vmatpush1.bf16.xpose.msra.mxu0 0
    %84 = vmatprep.subr.bf16.mxu0 0
    %85 = vmatpush1.bf16.xpose.msra.mxu0 0
    %86 = vmatprep.subr.bf16.mxu0 0
    %87 = vmatpush1.bf16.xpose.msra.mxu0 0
    %88 = vmatprep.subr.bf16.mxu0 0
    %89 = vmatpush1.bf16.xpose.msra.mxu0 0
    %90 = vmatprep.subr.bf16.mxu0 0
    %91 = vmatpush1.bf16.xpose.msra.mxu0 0
    %92 = vmatprep.subr.bf16.mxu0 0
    %93 = vmatpush1.bf16.xpose.msra.mxu0 0
    %94 = vmatprep.subr.bf16.mxu0 0
    %95 = vmatpush1.bf16.xpose.msra.mxu0 0
    %96 = vmatprep.subr.bf16.mxu0 0
    %97 = vmatpush1.bf16.xpose.msra.mxu0 0
    %98 = vmatprep.subr.bf16.mxu0 0
    %99 = vmatpush1.bf16.xpose.msra.mxu0 0
    %100 = vmatprep.mubr.bf16.mxu0 0
    %101 = vmatmul.mubr.bf16.gmra.mrb[0].mxu0 %v63
    %v102 = vpop.f32.mrb[0].mxu0
    %v103 = vadd.f32 0.0, %v102
    %v104 = vpop.f32.mrb[0].mxu0
    %v105 = vpop.f32.mrb[0].mxu0
    %v106 = vpop.f32.mrb[0].mxu0
    %107 = vdwg.mxu0
    %v110 = vunpack.c.l.b16 %v50
    %v111 = vunpack.c.l.b16 %v51
    %v112 = vpack.c.b16 %v111, %v110
    %v114 = vsel %vm61, %v54, 0
    %v117 = vsel %vm61, %v112, 0
    %119 = vmatprep.subr.bf16.mxu0 0
    %120 = vmatpush1.bf16.xpose.msra.mxu0 %v117
    %121 = vmatprep.subr.bf16.mxu0 0
    %122 = vmatpush1.bf16.xpose.msra.mxu0 0
    %123 = vmatprep.subr.bf16.mxu0 0
    %124 = vmatpush1.bf16.xpose.msra.mxu0 0
    %125 = vmatprep.subr.bf16.mxu0 0
    %126 = vmatpush1.bf16.xpose.msra.mxu0 0
    %127 = vmatprep.subr.bf16.mxu0 0
    %128 = vmatpush1.bf16.xpose.msra.mxu0 0
    %129 = vmatprep.subr.bf16.mxu0 0
    %130 = vmatpush1.bf16.xpose.msra.mxu0 0
    %131 = vmatprep.subr.bf16.mxu0 0
    %132 = vmatpush1.bf16.xpose.msra.mxu0 0
    %133 = vmatprep.subr.bf16.mxu0 0
    %134 = vmatpush1.bf16.xpose.msra.mxu0 0
    %135 = vmatprep.subr.bf16.mxu0 0
    %136 = vmatpush1.bf16.xpose.msra.mxu0 0
    %137 = vmatprep.subr.bf16.mxu0 0
    %138 = vmatpush1.bf16.xpose.msra.mxu0 0
    %139 = vmatprep.subr.bf16.mxu0 0
    %140 = vmatpush1.bf16.xpose.msra.mxu0 0
    %141 = vmatprep.subr.bf16.mxu0 0
    %142 = vmatpush1.bf16.xpose.msra.mxu0 0
    %143 = vmatprep.subr.bf16.mxu0 0
    %144 = vmatpush1.bf16.xpose.msra.mxu0 0
    %145 = vmatprep.subr.bf16.mxu0 0
    %146 = vmatpush1.bf16.xpose.msra.mxu0 0
    %147 = vmatprep.subr.bf16.mxu0 0
    %148 = vmatpush1.bf16.xpose.msra.mxu0 0
    %149 = vmatprep.subr.bf16.mxu0 0
    %150 = vmatpush1.bf16.xpose.msra.mxu0 0
    %151 = vmatprep.mubr.bf16.mxu0 0
    %152 = vmatmul.mubr.bf16.gmra.mrb[0].mxu0 %v114
    %v153 = vpop.f32.mrb[0].mxu0
    %v154 = vadd.f32 %v103, %v153
    %v155 = vpop.f32.mrb[0].mxu0
    %v156 = vpop.f32.mrb[0].mxu0
    %v157 = vpop.f32.mrb[0].mxu0
    %158 = vdwg.mxu0
    %v159 = vld [vmem:[%s4] sm:$0x1]
    %v160 = vunpack.c.l.bf16 %v159
    %162 = vset.pattern.permute.xlu0 0
    %163 = vperm.xlu0 %162, %v160
    %v164 = vpop.permute.xlu0 %163
    %v167 = vunpack.c.l.s4 269488144
    %v168 = vunpack.c.0.s8 %v167
    %v169 = vlaneseq
    %v170 = vshrl.u32 %v169, 7
    %v171 = vsub.s32 %v168, %v170
    %v172 = vrot.slane %v164, %v171
    %v173 = vadd.f32 %v154, %v172
    %vm174 = vcmask 123904
    %v175 = vsel %vm174, %v173, -inf
    %v176 = vrot.slane %v175, 4
    %v177 = vmax.f32 %v175, %v176
    %v178 = vrot.slane %v177, 2
    %v179 = vmax.f32 %v177, %v178
    %v180 = vrot.slane %v179, 1
    %v181 = vmax.f32 %v179, %v180
    %v182 = vsub.f32 %v173, %v181
    %v183 = vmul.f32 %v182, 1.442695
    %v184 = vpow.pop %v183
    %v185 = vsel %vm174, %v184, 0.0
    %v186 = vrot.slane %v185, 4
    %v187 = vadd.f32 %v185, %v186
    %v188 = vrot.slane %v187, 2
    %v189 = vadd.f32 %v187, %v188
    %v190 = vrot.slane %v189, 1
    %v191 = vadd.f32 %v189, %v190
    %v192 = vrcp.pop %v191
    %v193 = vmul.f32 %v184, %v192
    %194 = vst.msk [vmem:[#allocation7] sm:$0x3] %vm174, %v193
    // Predicated region
    $region30: #{tpu_custom_call.1} parent=1 // pred_check
      _
    $region31: #{tpu_custom_call.1} parent=1 // pred_check_branch
      %196 = sbr.rel (0) target = $region33
    $region32: #{tpu_custom_call.1} parent=1 // pred_region
      %s198 = ssub.s32 32, 32
      %199 = vsyncadd [#allocation4], %s198
      %s201 = sshll.u32 [#allocation7], 4
      %s202 = int_to_ptr.vmem [resolvable:$true] %s201
      %204 = dma.vmem_to_hbm [thread:$0]  %s202, 32, %s5, [#allocation4]
    $region33: #{tpu_custom_call.1} parent=1 // pred_fallthru
      _
    // Predicated region
    $region34: #{tpu_custom_call.1} parent=1 // pred_check
      _
    $region35: #{tpu_custom_call.1} parent=1 // pred_check_branch
      %206 = sbr.rel (0) target = $region37
    $region36: #{tpu_custom_call.1} parent=1 // pred_region
      %207 = dma.done [#allocation4], 32
    $region37: #{tpu_custom_call.1} parent=1 // pred_fallthru
      _
    %208 = vsyncpa [#allocation3], 1
    %209 = vsyncpa [#allocation6], 1
    %210 = vsyncpa [#allocation4], 1

</llo_original>
